<compile_context>
chip_gen: v5e
topology: v5e:2x2
jax: 0.10.0
libtpu: 0.0.40
codegen_flags: <defaults>
</compile_context>

<pallas_src>
import jax
import jax.numpy as jnp
from jax.experimental import pallas as pl
from jax.experimental.pallas import tpu as pltpu


def fcnet_kernel(x_ref, w1_ref, s1_ref, t1_ref,
                 w2_ref, s2_ref, t2_ref,
                 w3_ref, b3_ref, o_ref):
    # block 1: Linear + BatchNorm1d (folded) + ReLU   (Dropout = identity)
    x = x_ref[...]
    h1 = jnp.dot(x, w1_ref[...], preferred_element_type=jnp.float32)
    h1 = jnp.maximum(h1 * s1_ref[...] + t1_ref[...], 0.0)
    # block 2: Linear + BatchNorm1d (folded) + ReLU
    h2 = jnp.dot(h1, w2_ref[...], preferred_element_type=jnp.float32)
    h2 = jnp.maximum(h2 * s2_ref[...] + t2_ref[...], 0.0)
    # final Linear(z_dim, num_classes) -- columns padded to 128 (lane-dense)
    out = jnp.dot(h2, w3_ref[...], preferred_element_type=jnp.float32) + b3_ref[...]
    o_ref[...] = out.astype(o_ref.dtype)


def _round_up(a, m):
    return ((a + m - 1) // m) * m


def fcnet_sarem_forward(x, attr, params, *, tb=512, eps=1e-5):
    """x: (B, x_dim_full) float32.  attr: integer index array (column select)."""
    B, x_dim_full = x.shape

    # --- glue (tiny, one-time): BN folding + attr fold into W1, in plain JAX ---
    def fold(b, gamma, beta, rmean, rvar):
        scale = gamma / jnp.sqrt(rvar + eps)          # (F,)
        shift = beta - rmean * scale
        # y = (x@W + b)*scale + shift = (x@W)*scale + (b*scale + shift)
        return scale[None, :], (b * scale + shift)[None, :]

    s1, t1 = fold(params["b1"], params["g1"], params["be1"], params["rm1"], params["rv1"])
    s2, t2 = fold(params["b2"], params["g2"], params["be2"], params["rm2"], params["rv2"])

    w1, w2, w3 = params["w1"], params["w2"], params["w3"]
    hid = w1.shape[1]
    z = w2.shape[1]
    C = w3.shape[1]

    # Fold the x[:, attr] gather into W1: x @ W1_full == x[:, attr] @ w1.
    # (.add handles duplicate indices in attr correctly.)
    w1_full = jnp.zeros((x_dim_full, hid), w1.dtype).at[attr].add(w1)

    # Lane-dense output: pad final layer to a multiple of 128 columns.
    Cp = _round_up(C, 128)
    w3p = jnp.pad(w3, ((0, 0), (0, Cp - C)))
    b3p = jnp.pad(params["b3"], (0, Cp - C))[None, :]

    # Batch tiling: big tiles amortize per-step overhead; tiny batches use a
    # single (padded-to-8) block so grid=(1,).
    tb_eff = min(tb, _round_up(B, 8))
    pB = _round_up(B, tb_eff)
    xs = x if pB == B else jnp.pad(x, ((0, pB - B), (0, 0)))

    grid = (pB // tb_eff,)
    full = lambda i: (0, 0)
    out = pl.pallas_call(
        fcnet_kernel,
        out_shape=jax.ShapeDtypeStruct((pB, Cp), jnp.float32),
        grid_spec=pltpu.PrefetchScalarGridSpec(
            num_scalar_prefetch=0,
            grid=grid,
            in_specs=[
                pl.BlockSpec((tb_eff, x_dim_full), lambda i: (i, 0)),  # x tile
                pl.BlockSpec((x_dim_full, hid), full),                 # W1 (attr-folded)
                pl.BlockSpec((1, hid), full),                          # scale1
                pl.BlockSpec((1, hid), full),                          # shift1
                pl.BlockSpec((hid, z), full),                          # W2
                pl.BlockSpec((1, z), full),                            # scale2
                pl.BlockSpec((1, z), full),                            # shift2
                pl.BlockSpec((z, Cp), full),                           # W3 (lane-padded)
                pl.BlockSpec((1, Cp), full),                           # b3 (lane-padded)
            ],
            out_specs=pl.BlockSpec((tb_eff, Cp), lambda i: (i, 0)),
        ),
        compiler_params=pltpu.CompilerParams(
            dimension_semantics=("parallel",)),  # no cross-iter carry -> megacore on v7x
    )(xs, w1_full, s1, t1, w2, s2, t2, w3p, b3p)

    out = out[:B, :C]
    # forward ends with x.view(x.size(0), -1): already (B, num_classes)
    return out.reshape(B, -1)


def _reference_forward(x, attr, params, eps=1e-5):
    xs = x[:, attr]

    def bn(h, g, be, rm, rv):
        return (h - rm) / jnp.sqrt(rv + eps) * g + be

    h = xs @ params["w1"] + params["b1"]
    h = jnp.maximum(bn(h, params["g1"], params["be1"], params["rm1"], params["rv1"]), 0.0)
    h = h @ params["w2"] + params["b2"]
    h = jnp.maximum(bn(h, params["g2"], params["be2"], params["rm2"], params["rv2"]), 0.0)
    h = h @ params["w3"] + params["b3"]
    return h.reshape(h.shape[0], -1)


if __name__ == "__main__":
    # module hyper-params (small, consistent with __init__)
    x_dim_full = 16
    attr = jnp.array([0, 2, 3, 5, 6, 7, 9, 11, 13, 15], dtype=jnp.int32)
    x_dim = int(attr.shape[0])          # features after x[:, attr]
    hid_dim = 64
    z_dim = 64
    num_classes = 5
    batch = 2

    key = jax.random.PRNGKey(0)
    ks = jax.random.split(key, 16)

    def lin_init(kw, kb, fan_in, fan_out):
        bound = 1.0 / jnp.sqrt(fan_in)
        w = jax.random.uniform(kw, (fan_in, fan_out), jnp.float32, -bound, bound)
        b = jax.random.uniform(kb, (fan_out,), jnp.float32, -bound, bound)
        return w, b

    w1, b1 = lin_init(ks[0], ks[1], x_dim, hid_dim)
    w2, b2 = lin_init(ks[2], ks[3], hid_dim, z_dim)
    w3, b3 = lin_init(ks[4], ks[5], z_dim, num_classes)

    params = dict(
        w1=w1, b1=b1,
        g1=jax.random.uniform(ks[6], (hid_dim,), jnp.float32, 0.5, 1.5),
        be1=jax.random.normal(ks[7], (hid_dim,)) * 0.1,
        rm1=jax.random.normal(ks[8], (hid_dim,)) * 0.1,
        rv1=jax.random.uniform(ks[9], (hid_dim,), jnp.float32, 0.5, 1.5),
        w2=w2, b2=b2,
        g2=jax.random.uniform(ks[10], (z_dim,), jnp.float32, 0.5, 1.5),
        be2=jax.random.normal(ks[11], (z_dim,)) * 0.1,
        rm2=jax.random.normal(ks[12], (z_dim,)) * 0.1,
        rv2=jax.random.uniform(ks[13], (z_dim,), jnp.float32, 0.5, 1.5),
        w3=w3, b3=b3,
    )

    x = jax.random.normal(ks[14], (batch, x_dim_full), jnp.float32)

    # small-batch path (grid=(1,))
    out = fcnet_sarem_forward(x, attr, params)
    out = jax.block_until_ready(out)
    ref = _reference_forward(x, attr, params)
    assert out.shape == (batch, num_classes)
    assert jnp.allclose(out, ref, atol=1e-4, rtol=1e-4)

    # larger batch exercises the tiled/gridded path with big lane-dense tiles
    big_B = 1536
    xb = jax.random.normal(ks[15], (big_B, x_dim_full), jnp.float32)
    out_b = jax.block_until_ready(fcnet_sarem_forward(xb, attr, params))
    ref_b = _reference_forward(xb, attr, params)
    assert out_b.shape == (big_B, num_classes)
    assert jnp.allclose(out_b, ref_b, atol=1e-4, rtol=1e-4)

    print("KERNEL_OK")
</pallas_src>

<mosaic_0001>
module attributes {stable_mosaic.version = 11 : i64} {
  func.func @fcnet_kernel(%arg0: i32, %arg1: memref<8x16xf32, #tpu.memory_space<vmem>>, %arg2: memref<16x64xf32, #tpu.memory_space<vmem>>, %arg3: memref<1x64xf32, #tpu.memory_space<vmem>>, %arg4: memref<1x64xf32, #tpu.memory_space<vmem>>, %arg5: memref<64x64xf32, #tpu.memory_space<vmem>>, %arg6: memref<1x64xf32, #tpu.memory_space<vmem>>, %arg7: memref<1x64xf32, #tpu.memory_space<vmem>>, %arg8: memref<64x128xf32, #tpu.memory_space<vmem>>, %arg9: memref<1x128xf32, #tpu.memory_space<vmem>>, %arg10: memref<8x128xf32, #tpu.memory_space<vmem>>) attributes {dimension_semantics = [#tpu.dimension_semantics<parallel>], iteration_bounds = array<i64: 1>, scalar_prefetch = 0 : i64, scratch_operands = 0 : i64, tpu.core_type = #tpu.core_type<tc>, window_params = [{transform_indices = @transform_0, window_bounds = array<i64: 8, 16>}, {pipeline_mode = #tpu.pipeline_mode<synchronous>, transform_indices = @transform_1, window_bounds = array<i64: 16, 64>}, {pipeline_mode = #tpu.pipeline_mode<synchronous>, transform_indices = @transform_2, window_bounds = array<i64: 1, 64>}, {pipeline_mode = #tpu.pipeline_mode<synchronous>, transform_indices = @transform_3, window_bounds = array<i64: 1, 64>}, {pipeline_mode = #tpu.pipeline_mode<synchronous>, transform_indices = @transform_4, window_bounds = array<i64: 64, 64>}, {pipeline_mode = #tpu.pipeline_mode<synchronous>, transform_indices = @transform_5, window_bounds = array<i64: 1, 64>}, {pipeline_mode = #tpu.pipeline_mode<synchronous>, transform_indices = @transform_6, window_bounds = array<i64: 1, 64>}, {pipeline_mode = #tpu.pipeline_mode<synchronous>, transform_indices = @transform_7, window_bounds = array<i64: 64, 128>}, {pipeline_mode = #tpu.pipeline_mode<synchronous>, transform_indices = @transform_8, window_bounds = array<i64: 1, 128>}, {transform_indices = @transform_9, window_bounds = array<i64: 8, 128>}]} {
    %c0 = arith.constant 0 : index
    %c0_0 = arith.constant 0 : index
    %0 = vector.load %arg1[%c0, %c0_0] : memref<8x16xf32, #tpu.memory_space<vmem>>, vector<8x16xf32>
    %c0_1 = arith.constant 0 : index
    %c0_2 = arith.constant 0 : index
    %1 = vector.load %arg2[%c0_1, %c0_2] : memref<16x64xf32, #tpu.memory_space<vmem>>, vector<16x64xf32>
    %cst = arith.constant dense<0.000000e+00> : vector<8x64xf32>
    %2 = tpu.matmul %0, %1, %cst {dimension_numbers = #tpu.dot_dimension_numbers<[1], [0], [0], [1], [0, 0, 1, 1], [], []>} : vector<8x16xf32>, vector<16x64xf32>, vector<8x64xf32> -> vector<8x64xf32>
    %c0_3 = arith.constant 0 : index
    %c0_4 = arith.constant 0 : index
    %3 = vector.load %arg3[%c0_3, %c0_4] : memref<1x64xf32, #tpu.memory_space<vmem>>, vector<1x64xf32>
    %4 = vector.broadcast %3 : vector<1x64xf32> to vector<8x64xf32>
    %5 = arith.mulf %2, %4 : vector<8x64xf32>
    %c0_5 = arith.constant 0 : index
    %c0_6 = arith.constant 0 : index
    %6 = vector.load %arg4[%c0_5, %c0_6] : memref<1x64xf32, #tpu.memory_space<vmem>>, vector<1x64xf32>
    %7 = vector.broadcast %6 : vector<1x64xf32> to vector<8x64xf32>
    %8 = arith.addf %5, %7 : vector<8x64xf32>
    %cst_7 = arith.constant 0.000000e+00 : f32
    %9 = vector.broadcast %cst_7 : f32 to vector<8x64xf32>
    %10 = arith.maximumf %8, %9 : vector<8x64xf32>
    %c0_8 = arith.constant 0 : index
    %c0_9 = arith.constant 0 : index
    %11 = vector.load %arg5[%c0_8, %c0_9] : memref<64x64xf32, #tpu.memory_space<vmem>>, vector<64x64xf32>
    %cst_10 = arith.constant dense<0.000000e+00> : vector<8x64xf32>
    %12 = tpu.matmul %10, %11, %cst_10 {dimension_numbers = #tpu.dot_dimension_numbers<[1], [0], [0], [1], [0, 0, 1, 1], [], []>} : vector<8x64xf32>, vector<64x64xf32>, vector<8x64xf32> -> vector<8x64xf32>
    %c0_11 = arith.constant 0 : index
    %c0_12 = arith.constant 0 : index
    %13 = vector.load %arg6[%c0_11, %c0_12] : memref<1x64xf32, #tpu.memory_space<vmem>>, vector<1x64xf32>
    %14 = vector.broadcast %13 : vector<1x64xf32> to vector<8x64xf32>
    %15 = arith.mulf %12, %14 : vector<8x64xf32>
    %c0_13 = arith.constant 0 : index
    %c0_14 = arith.constant 0 : index
    %16 = vector.load %arg7[%c0_13, %c0_14] : memref<1x64xf32, #tpu.memory_space<vmem>>, vector<1x64xf32>
    %17 = vector.broadcast %16 : vector<1x64xf32> to vector<8x64xf32>
    %18 = arith.addf %15, %17 : vector<8x64xf32>
    %cst_15 = arith.constant 0.000000e+00 : f32
    %19 = vector.broadcast %cst_15 : f32 to vector<8x64xf32>
    %20 = arith.maximumf %18, %19 : vector<8x64xf32>
    %c0_16 = arith.constant 0 : index
    %c0_17 = arith.constant 0 : index
    %21 = vector.load %arg8[%c0_16, %c0_17] : memref<64x128xf32, #tpu.memory_space<vmem>>, vector<64x128xf32>
    %cst_18 = arith.constant dense<0.000000e+00> : vector<8x128xf32>
    %22 = tpu.matmul %20, %21, %cst_18 {dimension_numbers = #tpu.dot_dimension_numbers<[1], [0], [0], [1], [0, 0, 1, 1], [], []>} : vector<8x64xf32>, vector<64x128xf32>, vector<8x128xf32> -> vector<8x128xf32>
    %c0_19 = arith.constant 0 : index
    %c0_20 = arith.constant 0 : index
    %23 = vector.load %arg9[%c0_19, %c0_20] : memref<1x128xf32, #tpu.memory_space<vmem>>, vector<1x128xf32>
    %24 = vector.broadcast %23 : vector<1x128xf32> to vector<8x128xf32>
    %25 = arith.addf %22, %24 : vector<8x128xf32>
    %c0_21 = arith.constant 0 : index
    %c0_22 = arith.constant 0 : index
    %26 = vector.load %arg10[%c0_21, %c0_22] : memref<8x128xf32, #tpu.memory_space<vmem>>, vector<8x128xf32>
    tpu.vector_store %arg10[%c0_21, %c0_22], %25 {strides = array<i32>} : memref<8x128xf32, #tpu.memory_space<vmem>>, vector<8x128xf32>,
    return
  }
  func.func @transform_0(%arg0: i32) -> (i32, i32) {
    %c0_i32 = arith.constant 0 : i32
    %c0_i32_0 = arith.constant 0 : i32
    return %arg0, %c0_i32 : i32, i32
  }
  func.func @transform_1(%arg0: i32) -> (i32, i32) {
    %c0_i32 = arith.constant 0 : i32
    %c0_i32_0 = arith.constant 0 : i32
    %c0_i32_1 = arith.constant 0 : i32
    return %c0_i32, %c0_i32_0 : i32, i32
  }
  func.func @transform_2(%arg0: i32) -> (i32, i32) {
    %c0_i32 = arith.constant 0 : i32
    %c0_i32_0 = arith.constant 0 : i32
    %c0_i32_1 = arith.constant 0 : i32
    return %c0_i32, %c0_i32_0 : i32, i32
  }
  func.func @transform_3(%arg0: i32) -> (i32, i32) {
    %c0_i32 = arith.constant 0 : i32
    %c0_i32_0 = arith.constant 0 : i32
    %c0_i32_1 = arith.constant 0 : i32
    return %c0_i32, %c0_i32_0 : i32, i32
  }
  func.func @transform_4(%arg0: i32) -> (i32, i32) {
    %c0_i32 = arith.constant 0 : i32
    %c0_i32_0 = arith.constant 0 : i32
    %c0_i32_1 = arith.constant 0 : i32
    return %c0_i32, %c0_i32_0 : i32, i32
  }
  func.func @transform_5(%arg0: i32) -> (i32, i32) {
    %c0_i32 = arith.constant 0 : i32
    %c0_i32_0 = arith.constant 0 : i32
    %c0_i32_1 = arith.constant 0 : i32
    return %c0_i32, %c0_i32_0 : i32, i32
  }
  func.func @transform_6(%arg0: i32) -> (i32, i32) {
    %c0_i32 = arith.constant 0 : i32
    %c0_i32_0 = arith.constant 0 : i32
    %c0_i32_1 = arith.constant 0 : i32
    return %c0_i32, %c0_i32_0 : i32, i32
  }
  func.func @transform_7(%arg0: i32) -> (i32, i32) {
    %c0_i32 = arith.constant 0 : i32
    %c0_i32_0 = arith.constant 0 : i32
    %c0_i32_1 = arith.constant 0 : i32
    return %c0_i32, %c0_i32_0 : i32, i32
  }
  func.func @transform_8(%arg0: i32) -> (i32, i32) {
    %c0_i32 = arith.constant 0 : i32
    %c0_i32_0 = arith.constant 0 : i32
    %c0_i32_1 = arith.constant 0 : i32
    return %c0_i32, %c0_i32_0 : i32, i32
  }
  func.func @transform_9(%arg0: i32) -> (i32, i32) {
    %c0_i32 = arith.constant 0 : i32
    %c0_i32_0 = arith.constant 0 : i32
    return %arg0, %c0_i32 : i32, i32
  }
}

</mosaic_0001>

<llo_original>
// kernel: tpu_custom_call.1
$region0: #{tpu_custom_call.1}
  #allocation0 [shape = 'u32[]', space=smem, size = 0x4, offset = 0x4, fixed_abs, tag = 'smem constant byte address 0x4 - core index']
  #allocation1 [shape = 'u32[72,128]{1,0:T(1,128)}', space=vmem, size = 0x9000, scoped, tag = 'internal scratch']
  %s0 = inlined_call_operand.hbm [shape: f32[8,16], index: 0, kind: input, shape index: {}]
  %s1 = inlined_call_operand.hbm [shape: f32[16,64], index: 1, kind: input, shape index: {}]
  %s2 = inlined_call_operand.vmem [shape: f32[1,64], index: 2, kind: input, shape index: {}]
  %s3 = inlined_call_operand.vmem [shape: f32[1,64], index: 3, kind: input, shape index: {}]
  %s4 = inlined_call_operand.hbm [shape: f32[64,64], index: 4, kind: input, shape index: {}]
  %s5 = inlined_call_operand.vmem [shape: f32[1,64], index: 5, kind: input, shape index: {}]
  %s6 = inlined_call_operand.vmem [shape: f32[1,64], index: 6, kind: input, shape index: {}]
  %s7 = inlined_call_operand.hbm [shape: f32[64,128], index: 7, kind: input, shape index: {}]
  %s8 = inlined_call_operand.vmem [shape: f32[1,128], index: 8, kind: input, shape index: {}]
  %s9 = inlined_call_operand.hbm [shape: f32[8,128], index: 9, kind: output, shape index: {}]
  %s10 = sld [smem:[#allocation0]]
  $region62: #{tpu_custom_call.1} parent=0
    _
  %s12 = ssub.s32 1, %s10
  %s13 = scalar_select 0, %s12, %s10
  $region1: #{tpu_custom_call.1} parent=0
    #allocation2 [shape = 'u8[4096]{0}', space=vmem, size = 0x1000, scoped, tag = 'input window, operand 0, single buffered']
    #allocation3 [shape = 's32[1]{0}', space=sflag, size = 0x4, scoped, tag = 'scoped memory for tpu_custom_call.1']
    #allocation4 [shape = 's32[1]{0}', space=sflag, size = 0x4, scoped, tag = 'scoped memory for tpu_custom_call.1']
    #allocation5 [shape = 'u8[8192]{0}', space=vmem, size = 0x2000, scoped, tag = 'input window, operand 1, single buffered']
    #allocation6 [shape = 's32[1]{0}', space=sflag, size = 0x4, scoped, tag = 'scoped memory for tpu_custom_call.1']
    #allocation7 [shape = 'u8[32768]{0}', space=vmem, size = 0x8000, scoped, tag = 'input window, operand 4, single buffered']
    #allocation8 [shape = 'u8[32768]{0}', space=vmem, size = 0x8000, scoped, tag = 'input window, operand 7, single buffered']
    #allocation9 [shape = 's32[1]{0}', space=sflag, size = 0x4, scoped, tag = 'scoped memory for tpu_custom_call.1']
    #allocation10 [shape = 'u8[4096]{0}', space=vmem, size = 0x1000, scoped, tag = 'output window, operand 0, single buffered']
    %14 = vsyncpa [#allocation3], 0
    %15 = vsyncpa [#allocation6], 0
    %16 = vsyncpa [#allocation9], 0
    %17 = vsyncpa [#allocation4], 0
    // Predicated region
    $region2: #{tpu_custom_call.1} parent=1 // pred_check
      _
    $region3: #{tpu_custom_call.1} parent=1 // pred_check_branch
      %19 = sbr.rel (0) target = $region5
    $region4: #{tpu_custom_call.1} parent=1 // pred_region
      %21 = vsyncadd [#allocation3], 0
      %s23 = sshll.u32 %s0, 4
      %s24 = int_to_ptr.hbm [resolvable:$true] %s23
      %s25 = sshll.u32 [#allocation2], 4
      %s26 = int_to_ptr.vmem [resolvable:$true] %s25
      %28 = dma.hbm_to_vmem [thread:$0]  %s24, 128, %s26, [#allocation3]
    $region5: #{tpu_custom_call.1} parent=1 // pred_fallthru
      _
    // Predicated region
    $region6: #{tpu_custom_call.1} parent=1 // pred_check
      _
    $region7: #{tpu_custom_call.1} parent=1 // pred_check_branch
      %30 = sbr.rel (0) target = $region9
    $region8: #{tpu_custom_call.1} parent=1 // pred_region
      %32 = vsyncadd [#allocation6], 0
      %s33 = sshll.u32 %s1, 4
      %s34 = int_to_ptr.hbm [resolvable:$true] %s33
      %s35 = sshll.u32 [#allocation5], 4
      %s36 = int_to_ptr.vmem [resolvable:$true] %s35
      %41 = dma.hbm_to_vmem [thread:$0]  %s34, 256, %s36, [#allocation6], 128, 128, 8
    $region9: #{tpu_custom_call.1} parent=1 // pred_fallthru
      _
    // Predicated region
    $region10: #{tpu_custom_call.1} parent=1 // pred_check
      _
    $region11: #{tpu_custom_call.1} parent=1 // pred_check_branch
      %43 = sbr.rel (0) target = $region13
    $region12: #{tpu_custom_call.1} parent=1 // pred_region
      _
    $region13: #{tpu_custom_call.1} parent=1 // pred_fallthru
      _
    // Predicated region
    $region14: #{tpu_custom_call.1} parent=1 // pred_check
      _
    $region15: #{tpu_custom_call.1} parent=1 // pred_check_branch
      %45 = sbr.rel (0) target = $region17
    $region16: #{tpu_custom_call.1} parent=1 // pred_region
      _
    $region17: #{tpu_custom_call.1} parent=1 // pred_fallthru
      _
    // Predicated region
    $region18: #{tpu_custom_call.1} parent=1 // pred_check
      _
    $region19: #{tpu_custom_call.1} parent=1 // pred_check_branch
      %47 = sbr.rel (0) target = $region21
    $region20: #{tpu_custom_call.1} parent=1 // pred_region
      %49 = vsyncadd [#allocation6], 0
      %s50 = sshll.u32 %s4, 4
      %s51 = int_to_ptr.hbm [resolvable:$true] %s50
      %s52 = sshll.u32 [#allocation7], 4
      %s53 = int_to_ptr.vmem [resolvable:$true] %s52
      %58 = dma.hbm_to_vmem [thread:$0]  %s51, 1024, %s53, [#allocation6], 128, 128, 8
    $region21: #{tpu_custom_call.1} parent=1 // pred_fallthru
      _
    // Predicated region
    $region22: #{tpu_custom_call.1} parent=1 // pred_check
      _
    $region23: #{tpu_custom_call.1} parent=1 // pred_check_branch
      %60 = sbr.rel (0) target = $region25
    $region24: #{tpu_custom_call.1} parent=1 // pred_region
      _
    $region25: #{tpu_custom_call.1} parent=1 // pred_fallthru
      _
    // Predicated region
    $region26: #{tpu_custom_call.1} parent=1 // pred_check
      _
    $region27: #{tpu_custom_call.1} parent=1 // pred_check_branch
      %62 = sbr.rel (0) target = $region29
    $region28: #{tpu_custom_call.1} parent=1 // pred_region
      _
    $region29: #{tpu_custom_call.1} parent=1 // pred_fallthru
      _
    // Predicated region
    $region30: #{tpu_custom_call.1} parent=1 // pred_check
      _
    $region31: #{tpu_custom_call.1} parent=1 // pred_check_branch
      %64 = sbr.rel (0) target = $region33
    $region32: #{tpu_custom_call.1} parent=1 // pred_region
      %66 = vsyncadd [#allocation9], 0
      %s67 = sshll.u32 %s7, 4
      %s68 = int_to_ptr.hbm [resolvable:$true] %s67
      %s69 = sshll.u32 [#allocation8], 4
      %s70 = int_to_ptr.vmem [resolvable:$true] %s69
      %75 = dma.hbm_to_vmem [thread:$0]  %s68, 1024, %s70, [#allocation9], 128, 128, 8
    $region33: #{tpu_custom_call.1} parent=1 // pred_fallthru
      _
    // Predicated region
    $region34: #{tpu_custom_call.1} parent=1 // pred_check
      _
    $region35: #{tpu_custom_call.1} parent=1 // pred_check_branch
      %77 = sbr.rel (0) target = $region37
    $region36: #{tpu_custom_call.1} parent=1 // pred_region
      _
    $region37: #{tpu_custom_call.1} parent=1 // pred_fallthru
      _
    // Predicated region
    $region38: #{tpu_custom_call.1} parent=1 // pred_check
      _
    $region39: #{tpu_custom_call.1} parent=1 // pred_check_branch
      %79 = sbr.rel (0) target = $region41
    $region40: #{tpu_custom_call.1} parent=1 // pred_region
      %81 = dma.done [#allocation3], 128
    $region41: #{tpu_custom_call.1} parent=1 // pred_fallthru
      _
    // Predicated region
    $region42: #{tpu_custom_call.1} parent=1 // pred_check
      _
    $region43: #{tpu_custom_call.1} parent=1 // pred_check_branch
      %83 = sbr.rel (0) target = $region45
    $region44: #{tpu_custom_call.1} parent=1 // pred_region
      %85 = dma.done [#allocation6], 256
    $region45: #{tpu_custom_call.1} parent=1 // pred_fallthru
      _
    // Predicated region
    $region46: #{tpu_custom_call.1} parent=1 // pred_check
      _
    $region47: #{tpu_custom_call.1} parent=1 // pred_check_branch
      %87 = sbr.rel (0) target = $region49
    $region48: #{tpu_custom_call.1} parent=1 // pred_region
      %89 = dma.done [#allocation6], 1024
    $region49: #{tpu_custom_call.1} parent=1 // pred_fallthru
      _
    // Predicated region
    $region50: #{tpu_custom_call.1} parent=1 // pred_check
      _
    $region51: #{tpu_custom_call.1} parent=1 // pred_check_branch
      %91 = sbr.rel (0) target = $region53
    $region52: #{tpu_custom_call.1} parent=1 // pred_region
      %93 = dma.done [#allocation9], 1024
    $region53: #{tpu_custom_call.1} parent=1 // pred_fallthru
      _
    %v94 = vld [vmem:[#allocation2] sm:$0xff]
    %v95 = vld [vmem:[#allocation5] sm:$0xff]
    %v96 = vld [vmem:[#allocation5 + $0x8] sm:$0xff]
    %vm97 = vcmask 130048
    %v99 = vsel %vm97, %v94, 0
    %101 = vmatpush.msra.mxu0 0.0
    %102 = vmatpush.msra.mxu0 0.0
    %103 = vmatpush.msra.mxu0 0.0
    %104 = vmatpush.msra.mxu0 0.0
    %105 = vmatpush.msra.mxu0 0.0
    %106 = vmatpush.msra.mxu0 0.0
    %107 = vmatpush.msra.mxu0 0.0
    %108 = vmatpush.msra.mxu0 0.0
    %109 = vmatpush.msra.mxu0 0.0
    %110 = vmatpush.msra.mxu0 0.0
    %111 = vmatpush.msra.mxu0 0.0
    %112 = vmatpush.msra.mxu0 0.0
    %113 = vmatpush.msra.mxu0 0.0
    %114 = vmatpush.msra.mxu0 0.0
    %115 = vmatpush.msra.mxu0 %v96
    %116 = vmatpush.msra.mxu0 %v95
    %117 = vmatmul.f32.gmra.mxu0 %v99
    %v118 = vpop.f32.mrf.mxu0
    %v119 = vadd.f32 0.0, %v118
    %120 = vdwg.mxu0
    %v121 = vld [vmem:[%s2] sm:$0x1]
    %v123 = vperm.slane %v121, 0
    %v125 = vmul.f32 %v119, %v123
    %v126 = vld [vmem:[%s3] sm:$0x1]
    %v128 = vperm.slane %v126, 0
    %v130 = vadd.f32 %v125, %v128
    %v131 = vmax.f32 %v130, 0.0
    %v132 = vld [vmem:[#allocation7] sm:$0xff]
    %v133 = vld [vmem:[#allocation7 + $0x8] sm:$0xff]
    %v134 = vld [vmem:[#allocation7 + $0x10] sm:$0xff]
    %v135 = vld [vmem:[#allocation7 + $0x18] sm:$0xff]
    %v136 = vld [vmem:[#allocation7 + $0x20] sm:$0xff]
    %v137 = vld [vmem:[#allocation7 + $0x28] sm:$0xff]
    %v138 = vld [vmem:[#allocation7 + $0x30] sm:$0xff]
    %v139 = vld [vmem:[#allocation7 + $0x38] sm:$0xff]
    %vm140 = vcmask 523264
    %v142 = vsel %vm140, %v131, 0
    %144 = vmatpush.msra.mxu0 0.0
    %145 = vmatpush.msra.mxu0 0.0
    %146 = vmatpush.msra.mxu0 0.0
    %147 = vmatpush.msra.mxu0 0.0
    %148 = vmatpush.msra.mxu0 0.0
    %149 = vmatpush.msra.mxu0 0.0
    %150 = vmatpush.msra.mxu0 0.0
    %151 = vmatpush.msra.mxu0 0.0
    %152 = vmatpush.msra.mxu0 %v139
    %153 = vmatpush.msra.mxu0 %v138
    %154 = vmatpush.msra.mxu0 %v137
    %155 = vmatpush.msra.mxu0 %v136
    %156 = vmatpush.msra.mxu0 %v135
    %157 = vmatpush.msra.mxu0 %v134
    %158 = vmatpush.msra.mxu0 %v133
    %159 = vmatpush.msra.mxu0 %v132
    %160 = vmatmul.f32.gmra.mxu0 %v142
    %v161 = vpop.f32.mrf.mxu0
    %v162 = vadd.f32 0.0, %v161
    %163 = vdwg.mxu0
    %v164 = vld [vmem:[%s5] sm:$0x1]
    %v166 = vperm.slane %v164, 0
    %v168 = vmul.f32 %v162, %v166
    %v169 = vld [vmem:[%s6] sm:$0x1]
    %v171 = vperm.slane %v169, 0
    %v173 = vadd.f32 %v168, %v171
    %v174 = vmax.f32 %v173, 0.0
    %v175 = vld [vmem:[#allocation8] sm:$0xff]
    %v176 = vld [vmem:[#allocation8 + $0x8] sm:$0xff]
    %v177 = vld [vmem:[#allocation8 + $0x10] sm:$0xff]
    %v178 = vld [vmem:[#allocation8 + $0x18] sm:$0xff]
    %v179 = vld [vmem:[#allocation8 + $0x20] sm:$0xff]
    %v180 = vld [vmem:[#allocation8 + $0x28] sm:$0xff]
    %v181 = vld [vmem:[#allocation8 + $0x30] sm:$0xff]
    %v182 = vld [vmem:[#allocation8 + $0x38] sm:$0xff]
    %v183 = vld [vmem:[%s8] sm:$0x1]
    %v185 = vperm.slane %v183, 0
    %v188 = vsel %vm140, %v174, 0
    %190 = vmatpush.msra.mxu0 0.0
    %191 = vmatpush.msra.mxu0 0.0
    %192 = vmatpush.msra.mxu0 0.0
    %193 = vmatpush.msra.mxu0 0.0
    %194 = vmatpush.msra.mxu0 0.0
    %195 = vmatpush.msra.mxu0 0.0
    %196 = vmatpush.msra.mxu0 0.0
    %197 = vmatpush.msra.mxu0 0.0
    %198 = vmatpush.msra.mxu0 %v182
    %199 = vmatpush.msra.mxu0 %v181
    %200 = vmatpush.msra.mxu0 %v180
    %201 = vmatpush.msra.mxu0 %v179
    %202 = vmatpush.msra.mxu0 %v178
    %203 = vmatpush.msra.mxu0 %v177
    %204 = vmatpush.msra.mxu0 %v176
    %205 = vmatpush.msra.mxu0 %v175
    %206 = vmatmul.f32.gmra.mxu0 %v188
    %v207 = vpop.f32.mrf.mxu0
    %v208 = vadd.f32 %v185, %v207
    %209 = vdwg.mxu0
    %210 = vst [vmem:[#allocation10] sm:$0xff] %v208
    // Predicated region
    $region54: #{tpu_custom_call.1} parent=1 // pred_check
      _
    $region55: #{tpu_custom_call.1} parent=1 // pred_check_branch
      %212 = sbr.rel (0) target = $region57
    $region56: #{tpu_custom_call.1} parent=1 // pred_region
      %214 = vsyncadd [#allocation4], 0
      %s216 = sshll.u32 [#allocation10], 4
      %s217 = int_to_ptr.vmem [resolvable:$true] %s216
      %s218 = sshll.u32 %s9, 4
      %s219 = int_to_ptr.hbm [resolvable:$true] %s218
      %221 = dma.vmem_to_hbm [thread:$0]  %s217, 128, %s219, [#allocation4]
    $region57: #{tpu_custom_call.1} parent=1 // pred_fallthru
      _
    // Predicated region
    $region58: #{tpu_custom_call.1} parent=1 // pred_check
      _
    $region59: #{tpu_custom_call.1} parent=1 // pred_check_branch
      %223 = sbr.rel (0) target = $region61
    $region60: #{tpu_custom_call.1} parent=1 // pred_region
      %225 = dma.done [#allocation4], 128
    $region61: #{tpu_custom_call.1} parent=1 // pred_fallthru
      _
    %226 = vsyncpa [#allocation3], 1
    %227 = vsyncpa [#allocation6], 1
    %228 = vsyncpa [#allocation9], 1
    %229 = vsyncpa [#allocation4], 1

</llo_original>
